<compile_context>
chip_gen: v7x
topology: tpu7x:2x2x1
jax: 0.10.0
libtpu: 0.0.40
codegen_flags: <defaults>
</compile_context>

<pallas_src>
import math

import jax
import jax.numpy as jnp
from jax.experimental import pallas as pl
from jax.experimental.pallas import tpu as pltpu


def _gfp_kernel(x_ref, wo_ref, o_ref):
    # x_ref : (TILE_R, k) f32 -- k consecutive batch timesteps packed per output row
    # wo_ref: (2, L)      f32 -- row0 = tile([W,W]*2*pi, k), row1 = tile([0, pi/2] pattern, k)
    # o_ref : (TILE_R, L) f32 -- lane-dense collapsed output block (L = k*D, multiple of 128)
    x = x_ref[...]
    w = wo_ref[0:1, :]
    off = wo_ref[1:2, :]
    tile_r, k = x.shape
    L = w.shape[1]
    d = L // k
    # Expand x to the full L-lane width BEFORE the transcendental: the expensive
    # sin then runs on dense 128-lane vregs and one unmasked full-width store
    # follows.  The lane-broadcast/concat filler lands on idle XLU/VALU slack.
    parts = [jnp.broadcast_to(x[:, j:j + 1], (tile_r, d)) for j in range(k)]
    xe = parts[0] if k == 1 else jnp.concatenate(parts, axis=1)   # (TILE_R, L)
    # cos(t) = sin(t + pi/2): a single transcendental pass covers both halves.
    o_ref[...] = jnp.sin(xe * w + off)


def _round_up(a, m):
    return ((a + m - 1) // m) * m


def _cdiv(a, b):
    return -(-a // b)


def gaussian_fourier_projection(x, W, *, target_block_bytes=2 * 1024 * 1024,
                                force_kernel=False):
    """x: (B,) float timesteps; W: (embed_dim//2,) weights -> (B, embed_dim) f32."""
    B = int(x.shape[0])
    H = int(W.shape[0])
    D = 2 * H  # embed_dim

    x = x.astype(jnp.float32)
    W = W.astype(jnp.float32)
    two_pi = jnp.float32(2.0 * math.pi)

    # Small-problem fast path: kernel launch + grid fixed cost dwarfs the work.
    if not force_kernel and B * D < (1 << 20):
        proj = x[:, None] * W[None, :] * two_pi
        return jnp.concatenate([jnp.sin(proj), jnp.cos(proj)], axis=-1)

    # Host-side precompute (tiny): fold 2*pi into the weights, replace the
    # sin/cos concat with a single phase-shifted sin, and tile to full lane
    # width L so the kernel needs no per-column re-broadcasts.
    w_cat = jnp.concatenate([W, W]) * two_pi                                   # (D,)
    off = jnp.concatenate([jnp.zeros((H,), jnp.float32),
                           jnp.full((H,), 0.5 * math.pi, dtype=jnp.float32)])  # (D,)

    # Row-collapse factor so the output block's last dim is a multiple of 128.
    k = 128 // math.gcd(D, 128)
    L = k * D
    wo = jnp.stack([jnp.tile(w_cat, k), jnp.tile(off, k)], axis=0)             # (2, L)

    # Balanced batch tiling: pick the number of grid steps first, then split R
    # evenly (padding < 8 rows per step).  Force >=2 (up to 4) steps for
    # mid-size problems so both v7x TensorCores run and writeback overlaps.
    R = _cdiv(B, k)                                           # collapsed rows needed
    target_rows = max(8, (target_block_bytes // (L * 4)) // 8 * 8)
    n = _cdiv(R, target_rows)
    if R >= 16:
        n = max(n, min(4, R // 8))
    tile_r = _round_up(_cdiv(R, n), 8)
    r_pad = n * tile_r
    b_pad = r_pad * k

    x_pad = jnp.pad(x, (0, b_pad - B)) if b_pad != B else x
    x2 = x_pad.reshape(r_pad, k)

    out = pl.pallas_call(
        _gfp_kernel,
        out_shape=jax.ShapeDtypeStruct((r_pad, L), jnp.float32),
        grid=(n,),
        in_specs=[
            pl.BlockSpec((tile_r, k), lambda i: (i, 0)),
            pl.BlockSpec((2, L), lambda i: (0, 0)),
        ],
        out_specs=pl.BlockSpec((tile_r, L), lambda i: (i, 0)),
        compiler_params=pltpu.CompilerParams(dimension_semantics=("parallel",)),
    )(x2, wo)

    # (r_pad, k*D) has identical row-major bytes to (r_pad*k, D): free reshape,
    # then drop the padded rows.
    return out.reshape(b_pad, D)[:B]


if __name__ == "__main__":
    key = jax.random.PRNGKey(0)
    k_w, k_x = jax.random.split(key)

    embed_dim = 32
    scale = 30.0
    batch = 8

    # Deterministic parameter init mirroring torch.randn(embed_dim//2) * scale.
    W = jax.random.normal(k_w, (embed_dim // 2,), dtype=jnp.float32) * scale
    # Example timestep inputs.
    x = jax.random.uniform(k_x, (batch,), dtype=jnp.float32)

    # force_kernel=True so the Pallas path is exercised even at demo size.
    out = gaussian_fourier_projection(x, W, force_kernel=True)
    out = jax.block_until_ready(out)

    # Reference check in plain JAX (same math as the PyTorch module).
    proj_ref = x[:, None] * W[None, :] * 2.0 * math.pi
    ref = jnp.concatenate([jnp.sin(proj_ref), jnp.cos(proj_ref)], axis=-1)
    assert out.shape == (batch, embed_dim), out.shape
    # Phases reach a few hundred radians; kernel uses sin(t + pi/2) for cos and a
    # different (equally-f32) association order, so allow ~1e-3 absolute slack.
    assert jnp.allclose(out, ref, atol=1e-3, rtol=1e-3), "mismatch vs reference"

    print("KERNEL_OK")
</pallas_src>

<mosaic_0001>
module attributes {stable_mosaic.version = 11 : i64} {
  func.func @_gfp_kernel(%arg0: i32, %arg1: memref<8x4xf32, #tpu.memory_space<vmem>>, %arg2: memref<2x128xf32, #tpu.memory_space<vmem>>, %arg3: memref<8x128xf32, #tpu.memory_space<vmem>>) attributes {dimension_semantics = [#tpu.dimension_semantics<parallel>], iteration_bounds = array<i64: 1>, scalar_prefetch = 0 : i64, scratch_operands = 0 : i64, tpu.core_type = #tpu.core_type<tc>, window_params = [{transform_indices = @transform_0, window_bounds = array<i64: 8, 4>}, {pipeline_mode = #tpu.pipeline_mode<synchronous>, transform_indices = @transform_1, window_bounds = array<i64: 2, 128>}, {transform_indices = @transform_2, window_bounds = array<i64: 8, 128>}]} {
    %c0 = arith.constant 0 : index
    %c0_0 = arith.constant 0 : index
    %0 = vector.load %arg1[%c0, %c0_0] : memref<8x4xf32, #tpu.memory_space<vmem>>, vector<8x4xf32>
    %c0_1 = arith.constant 0 : index
    %c0_2 = arith.constant 0 : index
    %1 = vector.load %arg2[%c0_1, %c0_2] : memref<2x128xf32, #tpu.memory_space<vmem>>, vector<1x128xf32>
    %c1 = arith.constant 1 : index
    %c0_3 = arith.constant 0 : index
    %2 = vector.load %arg2[%c1, %c0_3] : memref<2x128xf32, #tpu.memory_space<vmem>>, vector<1x128xf32>
    %3 = vector.extract_strided_slice %0 {offsets = [0, 0], sizes = [8, 1], strides = [1, 1]} : vector<8x4xf32> to vector<8x1xf32>
    %4 = vector.shape_cast %3 : vector<8x1xf32> to vector<8x1xf32>
    %5 = vector.broadcast %4 : vector<8x1xf32> to vector<8x32xf32>
    %6 = vector.extract_strided_slice %0 {offsets = [0, 1], sizes = [8, 1], strides = [1, 1]} : vector<8x4xf32> to vector<8x1xf32>
    %7 = vector.shape_cast %6 : vector<8x1xf32> to vector<8x1xf32>
    %8 = vector.broadcast %7 : vector<8x1xf32> to vector<8x32xf32>
    %9 = vector.extract_strided_slice %0 {offsets = [0, 2], sizes = [8, 1], strides = [1, 1]} : vector<8x4xf32> to vector<8x1xf32>
    %10 = vector.shape_cast %9 : vector<8x1xf32> to vector<8x1xf32>
    %11 = vector.broadcast %10 : vector<8x1xf32> to vector<8x32xf32>
    %12 = vector.extract_strided_slice %0 {offsets = [0, 3], sizes = [8, 1], strides = [1, 1]} : vector<8x4xf32> to vector<8x1xf32>
    %13 = vector.shape_cast %12 : vector<8x1xf32> to vector<8x1xf32>
    %14 = vector.broadcast %13 : vector<8x1xf32> to vector<8x32xf32>
    %15 = tpu.concatenate %5, %8, %11, %14 in 1 : vector<8x32xf32>, vector<8x32xf32>, vector<8x32xf32>, vector<8x32xf32> -> vector<8x128xf32>
    %16 = vector.broadcast %1 : vector<1x128xf32> to vector<8x128xf32>
    %17 = arith.mulf %15, %16 : vector<8x128xf32>
    %18 = vector.broadcast %2 : vector<1x128xf32> to vector<8x128xf32>
    %19 = arith.addf %17, %18 : vector<8x128xf32>
    %20 = math.sin %19 : vector<8x128xf32>
    %c0_4 = arith.constant 0 : index
    %c0_5 = arith.constant 0 : index
    %21 = vector.load %arg3[%c0_4, %c0_5] : memref<8x128xf32, #tpu.memory_space<vmem>>, vector<8x128xf32>
    tpu.vector_store %arg3[%c0_4, %c0_5], %20 {strides = array<i32>} : memref<8x128xf32, #tpu.memory_space<vmem>>, vector<8x128xf32>,
    return
  }
  func.func @transform_0(%arg0: i32) -> (i32, i32) {
    %c0_i32 = arith.constant 0 : i32
    %c0_i32_0 = arith.constant 0 : i32
    return %arg0, %c0_i32 : i32, i32
  }
  func.func @transform_1(%arg0: i32) -> (i32, i32) {
    %c0_i32 = arith.constant 0 : i32
    %c0_i32_0 = arith.constant 0 : i32
    %c0_i32_1 = arith.constant 0 : i32
    return %c0_i32, %c0_i32_0 : i32, i32
  }
  func.func @transform_2(%arg0: i32) -> (i32, i32) {
    %c0_i32 = arith.constant 0 : i32
    %c0_i32_0 = arith.constant 0 : i32
    return %arg0, %c0_i32 : i32, i32
  }
}

</mosaic_0001>

<llo_original>
// kernel: tpu_custom_call.1
$region0: #{tpu_custom_call.1}
  #allocation0 [shape = 'u32[]', space=smem, size = 0x4, offset = 0x4, fixed_abs, tag = 'smem constant byte address 0x4 - core index']
  #allocation1 [shape = 'u32[144,128]{1,0:T(1,128)}', space=vmem, size = 0x12000, scoped, tag = 'internal scratch']
  %s0 = inlined_call_operand.vmem [shape: f32[8,4], index: 0, kind: input, shape index: {}]
  %s1 = inlined_call_operand.vmem [shape: f32[2,128], index: 1, kind: input, shape index: {}]
  %s2 = inlined_call_operand.hbm [shape: f32[8,128], index: 2, kind: output, shape index: {}]
  %s3 = sld [smem:[#allocation0]]
  $region18: #{tpu_custom_call.1} parent=0
    _
  %s5 = ssub.s32 1, %s3
  %s6 = scalar_select 0, %s5, %s3
  $region1: #{tpu_custom_call.1} parent=0
    #allocation2 [shape = 'u8[4096]{0}', space=vmem, size = 0x1000, scoped, tag = 'output window, operand 0, single buffered']
    #allocation3 [shape = 's32[1]{0}', space=sflag, size = 0x4, scoped, tag = 'scoped memory for tpu_custom_call.1']
    %7 = vsyncpa [#allocation3], 0
    // Predicated region
    $region2: #{tpu_custom_call.1} parent=1 // pred_check
      _
    $region3: #{tpu_custom_call.1} parent=1 // pred_check_branch
      %9 = sbr.rel (0) target = $region5
    $region4: #{tpu_custom_call.1} parent=1 // pred_region
      _
    $region5: #{tpu_custom_call.1} parent=1 // pred_fallthru
      _
    // Predicated region
    $region6: #{tpu_custom_call.1} parent=1 // pred_check
      _
    $region7: #{tpu_custom_call.1} parent=1 // pred_check_branch
      %11 = sbr.rel (0) target = $region9
    $region8: #{tpu_custom_call.1} parent=1 // pred_region
      _
    $region9: #{tpu_custom_call.1} parent=1 // pred_fallthru
      _
    %v12 = vld [vmem:[%s0] sm:$0xff]
    %v13 = vld [vmem:[%s1] sm:$0x1]
    %v14 = vld [vmem:[%s1 + $0x1] sm:$0x1]
    %16 = vset.pattern.permute.xlu0 0
    %17 = vperm.xlu0 %16, %v12
    %v18 = vpop.permute.xlu0 %17
    %20 = vset.pattern.permute.xlu0 1
    %21 = vperm.xlu0 %20, %v12
    %v22 = vpop.permute.xlu0 %21
    %24 = vset.pattern.permute.xlu0 2
    %25 = vperm.xlu0 %24, %v12
    %v26 = vpop.permute.xlu0 %25
    %28 = vset.pattern.permute.xlu0 3
    %29 = vperm.xlu0 %28, %v12
    %v30 = vpop.permute.xlu0 %29
    %vm32 = vcmask 261120
    %v33 = vsel %vm32, %v18, %v22
    %vm34 = vcmask 523264
    %v35 = vsel %vm34, %v33, %v26
    %vm36 = vcmask 785408
    %v37 = vsel %vm36, %v35, %v30
    %v38 = vlaneseq
    %v39 = vshrl.u32 %v38, 7
    %v40 = vsub.s32 0, %v39
    %v41 = vrot.slane %v13, %v40
    %v42 = vmul.f32 %v37, %v41
    %v43 = vlaneseq
    %v44 = vshrl.u32 %v43, 7
    %v45 = vsub.s32 0, %v44
    %v46 = vrot.slane %v14, %v45
    %v47 = vadd.f32 %v42, %v46
    %v48 = vand.u32 2147483647, %v47
    %vm49 = vcmp.le.f32.partialorder %v48, 0.7853982
    %vm50 = vcmp.lt.s32.totalorder %v47, 0
    %v51 = vand.u32 %v47, 2139095040
    %v52 = vshrl.u32 %v51, 23
    %v53 = vsub.s32 %v52, 127
    %v54 = vand.u32 2147483647, %v47
    %v55 = vand.u32 %v54, 8388607
    %v56 = vor.u32 %v55, 8388608
    %v57 = vsub.s32 0, %v56
    %v58 = vadd.s32 %v53, 1
    %vm59 = vcmp.gt.s32.totalorder %v58, 0
    %v60 = vsel %vm59, %v58, 0
    %v61 = vshrl.u32 %v60, 5
    %v62 = vand.u32 %v60, 31
    %v63 = vsub.s32 32, %v62
    %v64 = vshrl.u32 683565275, %v63
    %v65 = vshll.u32 683565275, %v62
    %v66 = vshrl.u32 2475754826, %v63
    %v67 = vor.u32 %v65, %v66
    %v68 = vshll.u32 2475754826, %v62
    %v69 = vshrl.u32 2131351028, %v63
    %v70 = vor.u32 %v68, %v69
    %v71 = vshll.u32 2131351028, %v62
    %v72 = vshrl.u32 2102212464, %v63
    %v73 = vor.u32 %v71, %v72
    %v74 = vshll.u32 2102212464, %v62
    %v75 = vshrl.u32 920167782, %v63
    %v76 = vor.u32 %v74, %v75
    %v77 = vshll.u32 920167782, %v62
    %v78 = vshrl.u32 1326507024, %v63
    %v79 = vor.u32 %v77, %v78
    %vm80 = vcmp.lt.s32.totalorder %v61, 1
    %vm81 = vcmp.lt.s32.totalorder %v61, 2
    %vm82 = vcmp.lt.s32.totalorder %v61, 3
    %vm83 = vcmp.lt.s32.totalorder %v61, 4
    %v84 = vsel %vm80, %v64, %v67
    %v85 = vsel %vm83, %v73, 2102212464
    %v86 = vsel %vm82, %v70, %v85
    %v87 = vsel %vm81, %v84, %v86
    %v88 = vsel %vm80, %v67, %v70
    %v89 = vsel %vm83, %v76, 920167782
    %v90 = vsel %vm82, %v73, %v89
    %v91 = vsel %vm81, %v88, %v90
    %v92 = vsel %vm80, %v70, %v73
    %v93 = vsel %vm83, %v79, 1326507024
    %v94 = vsel %vm82, %v76, %v93
    %v95 = vsel %vm81, %v92, %v94
    %v96 = vshll.u32 %v56, 8
    %v97 = vmul.u32.u64.compose %v96, %v95
    %v98 = vextract.low.u32 %v97
    %v99 = vextract.high.u32 %v97
    %v100 = vmul.u32.u64.compose %v96, %v91
    %v101 = vextract.low.u32 %v100
    %v102 = vextract.high.u32 %v100
    %v103 = vmul.u32 %v96, %v87
    %v104 = vadd.s32 %v99, %v101
    %vm105 = vc.u32 %v99, %v101
    %v106 = vadd.s32 %v102, 1
    %v107 = vsel %vm105, %v106, %v102
    %v108 = vadd.s32 %v103, %v107
    %v109 = vadd.s32 %v108, 536870912
    %v110 = vshrl.u32 %v109, 30
    %v111 = vshll.u32 %v110, 30
    %v112 = vsub.s32 %v108, %v111
    %vm113 = vcmp.lt.s32.totalorder %v112, 0
    %v114 = vsub.s32 0, %v112
    %v115 = vsel %vm113, %v114, %v112
    %v116 = vclz %v115
    %v117 = vsub.s32 %v116, 2
    %vm118 = vcmp.gt.s32.totalorder 0, %v117
    %v119 = vsel %vm118, 0, %v117
    %v120 = vsub.s32 32, %v119
    %v121 = vshll.u32 %v112, %v119
    %v122 = vshrl.u32 %v104, %v120
    %v123 = vor.u32 %v121, %v122
    %v124 = vsub.s32 4294967266, %v119
    %v125 = vadd.s32 %v124, 127
    %v126 = vshll.u32 %v125, 23
    %v127 = vor.u32 4788187, %v126
    %v128 = vand.u32 2147483647, %v127
    %v130 = vcvt.s32.f32 %v123
    %v131 = vmul.f32 %v130, %v128
    %v132 = vxor.u32 %v131, 2147483648
    %v133 = vsel %vm50, %v132, %v131
    %v134 = vsub.s32 4, %v110
    %v135 = vsel %vm50, %v134, %v110
    %v136 = vsel %vm49, %v47, %v133
    %v137 = vsel %vm49, 0, %v135
    %v138 = vcosq.f32.pop %v136
    %v139 = vsinq.f32.pop %v136
    %vm140 = vweird.f32 %v47
    %v141 = vadd.s32 %v137, 3
    %v142 = vand.u32 %v141, 3
    %vm143 = vcmp.lt.s32.totalorder %v142, 2
    %vm144 = vcmp.eq.s32.totalorder %v142, 0
    %v145 = vxor.u32 %v139, 2147483648
    %v146 = vsel %vm144, %v138, %v145
    %vm147 = vcmp.eq.s32.totalorder %v142, 2
    %v148 = vxor.u32 %v138, 2147483648
    %v149 = vsel %vm147, %v148, %v139
    %v150 = vsel %vm143, %v146, %v149
    %v151 = vsel %vm140, nan, %v150
    %152 = vst [vmem:[#allocation2] sm:$0xff] %v151
    // Predicated region
    $region10: #{tpu_custom_call.1} parent=1 // pred_check
      _
    $region11: #{tpu_custom_call.1} parent=1 // pred_check_branch
      %154 = sbr.rel (0) target = $region13
    $region12: #{tpu_custom_call.1} parent=1 // pred_region
      %s156 = ssub.s32 128, 128
      %157 = vsyncadd [#allocation3], %s156
      %s159 = sshll.u32 [#allocation2], 4
      %s160 = int_to_ptr.vmem [resolvable:$true] %s159
      %162 = dma.vmem_to_hbm [thread:$0]  %s160, 128, %s2, [#allocation3]
    $region13: #{tpu_custom_call.1} parent=1 // pred_fallthru
      _
    // Predicated region
    $region14: #{tpu_custom_call.1} parent=1 // pred_check
      _
    $region15: #{tpu_custom_call.1} parent=1 // pred_check_branch
      %164 = sbr.rel (0) target = $region17
    $region16: #{tpu_custom_call.1} parent=1 // pred_region
      %165 = dma.done [#allocation3], 128
    $region17: #{tpu_custom_call.1} parent=1 // pred_fallthru
      _
    %166 = vsyncpa [#allocation3], 1

</llo_original>
